<compile_context>
chip_gen: v7x
topology: tpu7x:2x2x1
jax: 0.10.0
libtpu: 0.0.40
codegen_flags: <defaults>
</compile_context>

<pallas_src>
import functools

import jax
import jax.numpy as jnp
from jax import lax
from jax.experimental import pallas as pl
from jax.experimental.pallas import tpu as pltpu

_LANES = 128
_DEFAULT_BLOCK_BYTES = 4 * 1024 * 1024     # HBM moved per input per grid step
_MAX_CHUNK_ROWS = 512                      # rows per inner fori_loop chunk


def _consist_kernel(vis_ref, ir_ref, fused_ref, out_ref, *,
                    consist_mode, rows, block_rows, inner, nb, chunk,
                    n_chunks, lanes, sub, ragged, guard_overhang, unroll):
    c = pl.program_id(0)          # split axis (megacore-parallel)
    i = pl.program_id(1)          # reduction axis
    g = c * inner + i             # global block index

    @pl.when(i == 0)
    def _():
        out_ref[...] = jnp.zeros(out_ref.shape, jnp.float32)

    def accumulate(masked):
        def body(j, carry):
            off = pl.multiple_of(j * chunk, chunk)
            v = vis_ref[pl.ds(off, chunk), :].astype(jnp.float32)
            r = ir_ref[pl.ds(off, chunk), :].astype(jnp.float32)
            f = fused_ref[pl.ds(off, chunk), :].astype(jnp.float32)
            dv = v - f
            dr = r - f
            if consist_mode == "l2":
                ev = dv * dv
                er = dr * dr
            else:  # 'l1'
                ev = jnp.abs(dv)
                er = jnp.abs(dr)
            if masked:
                # Only the globally-last (ragged) block takes this path.
                valid = rows - g * block_rows
                row_ids = lax.broadcasted_iota(jnp.int32, (chunk, lanes), 0) + off
                keep = row_ids < valid
                ev = jnp.where(keep, ev, 0.0)
                er = jnp.where(keep, er, 0.0)
            # Tile-aligned reshape; axis-0 sum is vreg-wise VPU adds.
            pv = ev.reshape(chunk // sub, sub, lanes).sum(axis=0)
            pr = er.reshape(chunk // sub, sub, lanes).sum(axis=0)
            out_ref[0, 0, :, :] += pv
            out_ref[0, 1, :, :] += pr
            return carry
        lax.fori_loop(0, n_chunks, body, 0, unroll=unroll)

    def compute():
        if ragged:
            @pl.when(g != nb - 1)
            def _():
                accumulate(masked=False)

            @pl.when(g == nb - 1)
            def _():
                accumulate(masked=True)
        else:
            accumulate(masked=False)

    if guard_overhang:
        # Odd block count with a 2-way split: the final (c, i) slot has no
        # real block; its input index is clamped in the index_map and it
        # contributes nothing here.
        @pl.when(g < nb)
        def _():
            compute()
    else:
        compute()


def _fallback_loss(vis, ir, fu, ir_compose, consist_mode):
    vis = vis.astype(jnp.float32)
    ir = ir.astype(jnp.float32)
    fu = fu.astype(jnp.float32)
    if consist_mode == "l2":
        lv = jnp.mean((vis - fu) ** 2)
        li = jnp.mean((ir - fu) ** 2)
    else:
        lv = jnp.mean(jnp.abs(vis - fu))
        li = jnp.mean(jnp.abs(ir - fu))
    return (lv + jnp.asarray(ir_compose, jnp.float32) * li) * jnp.float32(0.5)


def l_intensity_consist(image_visible, image_infrared, image_fused, ir_compose,
                        consist_mode="l1", *,
                        target_block_bytes=_DEFAULT_BLOCK_BYTES):
    assert image_visible.shape == image_infrared.shape == image_fused.shape
    n = image_visible.size
    itemsize = jnp.dtype(image_visible.dtype).itemsize
    pack = max(8, 32 // itemsize)        # sublane packing: 8 f32 / 16 bf16 / 32 u8

    if n % _LANES != 0 or (n // _LANES) < pack:
        # Rare misaligned / tiny case: plain XLA elementwise+reduce (no
        # lane-sparse Pallas blocks, no wrapper-side copies).
        return _fallback_loss(image_visible, image_infrared, image_fused,
                              ir_compose, consist_mode)

    lanes = _LANES
    rows = n // lanes

    # Zero-copy reshapes to lane-dense [rows, 128] slabs; cast happens in-kernel.
    vis2d = image_visible.reshape(rows, lanes)
    ir2d = image_infrared.reshape(rows, lanes)
    fu2d = image_fused.reshape(rows, lanes)

    # Dtype-aware block sizing: ~target_block_bytes of HBM per input per step.
    target_rows = max(pack, (target_block_bytes // (lanes * itemsize)) // pack * pack)
    block_rows = target_rows if rows >= target_rows else (rows // pack) * pack

    # Inner chunk (rows per fori_loop step); bounds live VMEM temporaries.
    if block_rows <= _MAX_CHUNK_ROWS:
        chunk = block_rows
    else:
        chunk = 8
        for cand in (_MAX_CHUNK_ROWS, 256, 128, 64, 32, 16, 8):
            if block_rows % cand == 0:
                chunk = cand
                break
    n_chunks = block_rows // chunk
    unroll = True if n_chunks <= 8 else 8

    nb = -(-rows // block_rows)                 # number of row blocks
    ragged = (rows % block_rows) != 0

    # 2-way split over a leading "parallel" axis whenever there are >= 2
    # blocks (v7x megacore pulls HBM with both TCs); odd nb handled by a
    # clamped index_map + in-kernel overhang guard.
    num_splits = 2 if nb >= 2 else 1
    inner = -(-nb // num_splits)
    guard_overhang = (inner * num_splits) != nb

    sub = 8                                     # f32 accumulator sublanes
    if guard_overhang:
        in_map = lambda c, i: (jnp.minimum(c * inner + i, nb - 1), 0)
    else:
        in_map = lambda c, i: (c * inner + i, 0)
    in_blk = pl.BlockSpec((block_rows, lanes), in_map)
    out_blk = pl.BlockSpec((1, 2, sub, lanes), lambda c, i: (c, 0, 0, 0))

    kernel = functools.partial(
        _consist_kernel, consist_mode=consist_mode, rows=rows,
        block_rows=block_rows, inner=inner, nb=nb, chunk=chunk,
        n_chunks=n_chunks, lanes=lanes, sub=sub, ragged=ragged,
        guard_overhang=guard_overhang, unroll=unroll)

    block_bytes = block_rows * lanes * itemsize
    # 3 inputs x 2 pipeline buffers + headroom for chunk temps / outputs.
    vmem_limit = int(min(64 << 20, max(16 << 20, 3 * 2 * block_bytes + (6 << 20))))

    cost = pl.CostEstimate(
        flops=6 * n, transcendentals=0,
        bytes_accessed=3 * n * itemsize + num_splits * 2 * sub * lanes * 4)

    partials = pl.pallas_call(
        kernel,
        out_shape=jax.ShapeDtypeStruct((num_splits, 2, sub, lanes), jnp.float32),
        grid_spec=pltpu.PrefetchScalarGridSpec(
            num_scalar_prefetch=0,
            grid=(num_splits, inner),
            in_specs=[in_blk, in_blk, in_blk],
            out_specs=out_blk),
        compiler_params=pltpu.CompilerParams(
            dimension_semantics=("parallel", "arbitrary"),
            vmem_limit_bytes=vmem_limit),
        cost_estimate=cost,
    )(vis2d, ir2d, fu2d)

    sums = jnp.sum(partials, axis=(0, 2, 3))    # -> (2,): [sum_vis, sum_ir]
    inv_n = jnp.float32(1.0 / n)
    ir_compose = jnp.asarray(ir_compose, jnp.float32)
    return (sums[0] * inv_n + ir_compose * (sums[1] * inv_n)) * jnp.float32(0.5)


def _reference(vis, ir, fused, ir_compose, consist_mode="l1"):
    vis = vis.astype(jnp.float32)
    ir = ir.astype(jnp.float32)
    fused = fused.astype(jnp.float32)
    if consist_mode == "l2":
        lv = jnp.mean((vis - fused) ** 2)
        li = jnp.mean((ir - fused) ** 2)
    else:
        lv = jnp.mean(jnp.abs(vis - fused))
        li = jnp.mean(jnp.abs(ir - fused))
    return (lv + ir_compose * li) / 2.0


if __name__ == "__main__":
    key = jax.random.PRNGKey(0)
    k1, k2, k3 = jax.random.split(key, 3)
    ir_compose = 0.7

    # Small NCHW images, matching the PyTorch module's convention.
    B, C, H, W = 2, 4, 16, 16
    vis = jax.random.uniform(k1, (B, C, H, W), jnp.float32)
    ir = jax.random.uniform(k2, (B, C, H, W), jnp.float32)
    fu = jax.random.uniform(k3, (B, C, H, W), jnp.float32)
    for mode in ("l1", "l2"):
        out = jax.block_until_ready(
            l_intensity_consist(vis, ir, fu, ir_compose, consist_mode=mode))
        ref = _reference(vis, ir, fu, ir_compose, consist_mode=mode)
        assert jnp.allclose(out, ref, atol=1e-5, rtol=1e-5), (mode, out, ref)

    # Exercise multi-block + ragged-tail + 2-way split + odd-nb overhang on
    # small data by forcing a tiny per-step block (40 rows -> nb=5, ragged).
    k4, k5, k6 = jax.random.split(jax.random.fold_in(key, 1), 3)
    B2, C2, H2, W2 = 2, 3, 64, 64
    vis2 = jax.random.uniform(k4, (B2, C2, H2, W2), jnp.float32)
    ir2 = jax.random.uniform(k5, (B2, C2, H2, W2), jnp.float32)
    fu2 = jax.random.uniform(k6, (B2, C2, H2, W2), jnp.float32)
    for mode in ("l1", "l2"):
        out = jax.block_until_ready(
            l_intensity_consist(vis2, ir2, fu2, ir_compose, consist_mode=mode,
                                target_block_bytes=40 * 128 * 4))
        ref = _reference(vis2, ir2, fu2, ir_compose, consist_mode=mode)
        assert jnp.allclose(out, ref, atol=1e-5, rtol=1e-5), (mode, out, ref)

    # bf16 inputs: in-kernel cast + dtype-aware (16-row-packed) blocking.
    visb, irb, fub = (x.astype(jnp.bfloat16) for x in (vis2, ir2, fu2))
    out = jax.block_until_ready(
        l_intensity_consist(visb, irb, fub, ir_compose, consist_mode="l1",
                            target_block_bytes=48 * 128 * 2))
    ref = _reference(visb, irb, fub, ir_compose, consist_mode="l1")
    assert jnp.allclose(out, ref, atol=1e-5, rtol=1e-5), (out, ref)

    # Misaligned (n % 128 != 0) dispatches to the plain-jnp fallback.
    k7, k8, k9 = jax.random.split(jax.random.fold_in(key, 2), 3)
    vis3 = jax.random.uniform(k7, (2, 3, 5, 7), jnp.float32)
    ir3 = jax.random.uniform(k8, (2, 3, 5, 7), jnp.float32)
    fu3 = jax.random.uniform(k9, (2, 3, 5, 7), jnp.float32)
    out = jax.block_until_ready(
        l_intensity_consist(vis3, ir3, fu3, ir_compose, consist_mode="l2"))
    ref = _reference(vis3, ir3, fu3, ir_compose, consist_mode="l2")
    assert jnp.allclose(out, ref, atol=1e-5, rtol=1e-5), (out, ref)

    print("KERNEL_OK")
</pallas_src>

<mosaic_0001>
module attributes {stable_mosaic.version = 11 : i64} {
  func.func @_consist_kernel(%arg0: i32, %arg1: i32, %arg2: memref<16x128xf32, #tpu.memory_space<vmem>>, %arg3: memref<16x128xf32, #tpu.memory_space<vmem>>, %arg4: memref<16x128xf32, #tpu.memory_space<vmem>>, %arg5: memref<1x2x8x128xf32, #tpu.memory_space<vmem>>) attributes {dimension_semantics = [#tpu.dimension_semantics<parallel>, #tpu.dimension_semantics<arbitrary>], iteration_bounds = array<i64: 1, 1>, scalar_prefetch = 0 : i64, scratch_operands = 0 : i64, tpu.core_type = #tpu.core_type<tc>, window_params = [{transform_indices = @transform_0, window_bounds = array<i64: 16, 128>}, {transform_indices = @transform_1, window_bounds = array<i64: 16, 128>}, {transform_indices = @transform_2, window_bounds = array<i64: 16, 128>}, {transform_indices = @transform_3, window_bounds = array<i64: 1, 2, 8, 128>}]} {
    %c0_i32 = arith.constant 0 : i32
    %0 = arith.cmpi eq, %arg1, %c0_i32 : i32
    %1 = arith.extui %0 : i1 to i32
    %c0_i32_0 = arith.constant 0 : i32
    %2 = arith.cmpi ne, %1, %c0_i32_0 : i32
    scf.if %2 {
      %cst_20 = arith.constant 0.000000e+00 : f32
      %31 = vector.broadcast %cst_20 : f32 to vector<1x2x8x128xf32>
      %c0_21 = arith.constant 0 : index
      %c0_22 = arith.constant 0 : index
      %c0_23 = arith.constant 0 : index
      %c0_24 = arith.constant 0 : index
      %32 = vector.load %arg5[%c0_21, %c0_22, %c0_23, %c0_24] : memref<1x2x8x128xf32, #tpu.memory_space<vmem>>, vector<1x2x8x128xf32>
      tpu.vector_store %arg5[%c0_21, %c0_22, %c0_23, %c0_24], %31 {strides = array<i32>} : memref<1x2x8x128xf32, #tpu.memory_space<vmem>>, vector<1x2x8x128xf32>,
    } else {
    }
    %c0_i32_1 = arith.constant 0 : i32
    %c16_i32 = arith.constant 16 : i32
    %3 = arith.muli %c0_i32_1, %c16_i32 : i32
    %4 = tpu.assume_multiple %3, 16 : i32
    %5 = arith.index_cast %4 : i32 to index
    %c0 = arith.constant 0 : index
    %6 = vector.load %arg2[%5, %c0] : memref<16x128xf32, #tpu.memory_space<vmem>>, vector<16x128xf32>
    %7 = arith.index_cast %4 : i32 to index
    %c0_2 = arith.constant 0 : index
    %8 = vector.load %arg3[%7, %c0_2] : memref<16x128xf32, #tpu.memory_space<vmem>>, vector<16x128xf32>
    %9 = arith.index_cast %4 : i32 to index
    %c0_3 = arith.constant 0 : index
    %10 = vector.load %arg4[%9, %c0_3] : memref<16x128xf32, #tpu.memory_space<vmem>>, vector<16x128xf32>
    %11 = arith.subf %6, %10 : vector<16x128xf32>
    %12 = arith.subf %8, %10 : vector<16x128xf32>
    %13 = math.absf %11 : vector<16x128xf32>
    %14 = math.absf %12 : vector<16x128xf32>
    %15 = vector.shape_cast %13 : vector<16x128xf32> to vector<2x8x128xf32>
    %cst = arith.constant dense<0.000000e+00> : vector<8x128xf32>
    %16 = vector.multi_reduction <add>, %15, %cst [0] : vector<2x8x128xf32> to vector<8x128xf32>
    %17 = vector.shape_cast %14 : vector<16x128xf32> to vector<2x8x128xf32>
    %cst_4 = arith.constant dense<0.000000e+00> : vector<8x128xf32>
    %18 = vector.multi_reduction <add>, %17, %cst_4 [0] : vector<2x8x128xf32> to vector<8x128xf32>
    %c0_5 = arith.constant 0 : index
    %c0_6 = arith.constant 0 : index
    %c0_7 = arith.constant 0 : index
    %c0_8 = arith.constant 0 : index
    %19 = vector.load %arg5[%c0_5, %c0_6, %c0_7, %c0_8] : memref<1x2x8x128xf32, #tpu.memory_space<vmem>>, vector<1x1x8x128xf32>
    %20 = vector.shape_cast %19 : vector<1x1x8x128xf32> to vector<8x128xf32>
    %21 = arith.addf %20, %16 : vector<8x128xf32>
    %c0_9 = arith.constant 0 : index
    %c0_10 = arith.constant 0 : index
    %c0_11 = arith.constant 0 : index
    %c0_12 = arith.constant 0 : index
    %22 = vector.load %arg5[%c0_9, %c0_10, %c0_11, %c0_12] : memref<1x2x8x128xf32, #tpu.memory_space<vmem>>, vector<1x1x8x128xf32>
    %23 = vector.shape_cast %22 : vector<1x1x8x128xf32> to vector<8x128xf32>
    %24 = vector.shape_cast %21 : vector<8x128xf32> to vector<1x1x8x128xf32>
    tpu.vector_store %arg5[%c0_9, %c0_10, %c0_11, %c0_12], %24 {strides = array<i32>} : memref<1x2x8x128xf32, #tpu.memory_space<vmem>>, vector<1x1x8x128xf32>,
    %c0_13 = arith.constant 0 : index
    %c1 = arith.constant 1 : index
    %c0_14 = arith.constant 0 : index
    %c0_15 = arith.constant 0 : index
    %25 = vector.load %arg5[%c0_13, %c1, %c0_14, %c0_15] : memref<1x2x8x128xf32, #tpu.memory_space<vmem>>, vector<1x1x8x128xf32>
    %26 = vector.shape_cast %25 : vector<1x1x8x128xf32> to vector<8x128xf32>
    %27 = arith.addf %26, %18 : vector<8x128xf32>
    %c0_16 = arith.constant 0 : index
    %c1_17 = arith.constant 1 : index
    %c0_18 = arith.constant 0 : index
    %c0_19 = arith.constant 0 : index
    %28 = vector.load %arg5[%c0_16, %c1_17, %c0_18, %c0_19] : memref<1x2x8x128xf32, #tpu.memory_space<vmem>>, vector<1x1x8x128xf32>
    %29 = vector.shape_cast %28 : vector<1x1x8x128xf32> to vector<8x128xf32>
    %30 = vector.shape_cast %27 : vector<8x128xf32> to vector<1x1x8x128xf32>
    tpu.vector_store %arg5[%c0_16, %c1_17, %c0_18, %c0_19], %30 {strides = array<i32>} : memref<1x2x8x128xf32, #tpu.memory_space<vmem>>, vector<1x1x8x128xf32>,
    %c1_i32 = arith.constant 1 : i32
    return
  }
  func.func @transform_0(%arg0: i32, %arg1: i32) -> (i32, i32) {
    %c1_i32 = arith.constant 1 : i32
    %0 = arith.muli %arg0, %c1_i32 : i32
    %1 = arith.addi %0, %arg1 : i32
    %c0_i32 = arith.constant 0 : i32
    %c0_i32_0 = arith.constant 0 : i32
    return %1, %c0_i32 : i32, i32
  }
  func.func @transform_1(%arg0: i32, %arg1: i32) -> (i32, i32) {
    %c1_i32 = arith.constant 1 : i32
    %0 = arith.muli %arg0, %c1_i32 : i32
    %1 = arith.addi %0, %arg1 : i32
    %c0_i32 = arith.constant 0 : i32
    %c0_i32_0 = arith.constant 0 : i32
    return %1, %c0_i32 : i32, i32
  }
  func.func @transform_2(%arg0: i32, %arg1: i32) -> (i32, i32) {
    %c1_i32 = arith.constant 1 : i32
    %0 = arith.muli %arg0, %c1_i32 : i32
    %1 = arith.addi %0, %arg1 : i32
    %c0_i32 = arith.constant 0 : i32
    %c0_i32_0 = arith.constant 0 : i32
    return %1, %c0_i32 : i32, i32
  }
  func.func @transform_3(%arg0: i32, %arg1: i32) -> (i32, i32, i32, i32) {
    %c0_i32 = arith.constant 0 : i32
    %c0_i32_0 = arith.constant 0 : i32
    %c0_i32_1 = arith.constant 0 : i32
    %c0_i32_2 = arith.constant 0 : i32
    return %arg0, %c0_i32, %c0_i32_0, %c0_i32_1 : i32, i32, i32, i32
  }
}

</mosaic_0001>

<llo_original>
// kernel: tpu_custom_call.1
$region0: #{tpu_custom_call.1}
  #allocation0 [shape = 'u32[]', space=smem, size = 0x4, offset = 0x4, fixed_abs, tag = 'smem constant byte address 0x4 - core index']
  #allocation1 [shape = 'u32[144,128]{1,0:T(1,128)}', space=vmem, size = 0x12000, scoped, tag = 'internal scratch']
  %s0 = inlined_call_operand.hbm [shape: f32[16,128], index: 0, kind: input, shape index: {}]
  %s1 = inlined_call_operand.hbm [shape: f32[16,128], index: 1, kind: input, shape index: {}]
  %s2 = inlined_call_operand.hbm [shape: f32[16,128], index: 2, kind: input, shape index: {}]
  %s3 = inlined_call_operand.hbm [shape: f32[1,2,8,128], index: 3, kind: output, shape index: {}]
  %s4 = sld [smem:[#allocation0]]
  $region38: #{tpu_custom_call.1} parent=0
    _
  %s6 = ssub.s32 1, %s4
  %s7 = scalar_select 0, %s6, %s4
  $region1: #{tpu_custom_call.1} parent=0
    #allocation2 [shape = 'u8[8192]{0}', space=vmem, size = 0x2000, scoped, tag = 'input window, operand 0, single buffered']
    #allocation3 [shape = 's32[1]{0}', space=sflag, size = 0x4, scoped, tag = 'scoped memory for tpu_custom_call.1']
    #allocation4 [shape = 's32[1]{0}', space=sflag, size = 0x4, scoped, tag = 'scoped memory for tpu_custom_call.1']
    #allocation5 [shape = 'u8[8192]{0}', space=vmem, size = 0x2000, scoped, tag = 'input window, operand 1, single buffered']
    #allocation6 [shape = 's32[1]{0}', space=sflag, size = 0x4, scoped, tag = 'scoped memory for tpu_custom_call.1']
    #allocation7 [shape = 'u8[8192]{0}', space=vmem, size = 0x2000, scoped, tag = 'input window, operand 2, single buffered']
    #allocation8 [shape = 'u8[8192]{0}', space=vmem, size = 0x2000, scoped, tag = 'output window, operand 0, single buffered']
    %8 = vsyncpa [#allocation3], 0
    %9 = vsyncpa [#allocation6], 0
    %10 = vsyncpa [#allocation4], 0
    // Predicated region
    $region2: #{tpu_custom_call.1} parent=1 // pred_check
      _
    $region3: #{tpu_custom_call.1} parent=1 // pred_check_branch
      %12 = sbr.rel (0) target = $region5
    $region4: #{tpu_custom_call.1} parent=1 // pred_region
      %s13 = sadd.s32 0, 0
      %s14 = smul.u32 2, %s13
      %s16 = ssub.s32 256, 256
      %17 = vsyncadd [#allocation3], %s16
      %s18 = smul.addr %s14, 128
      %s19 = scalar_lea.hbm %s0, %s18
      %s20 = sshll.u32 [#allocation2], 4
      %s21 = int_to_ptr.vmem [resolvable:$true] %s20
      %26 = dma.hbm_to_vmem [thread:$0]  %s19, 256, %s21, [#allocation3], 128, 128, 8
    $region5: #{tpu_custom_call.1} parent=1 // pred_fallthru
      _
    // Predicated region
    $region6: #{tpu_custom_call.1} parent=1 // pred_check
      _
    $region7: #{tpu_custom_call.1} parent=1 // pred_check_branch
      %28 = sbr.rel (0) target = $region9
    $region8: #{tpu_custom_call.1} parent=1 // pred_region
      %s29 = sadd.s32 0, 0
      %s30 = smul.u32 2, %s29
      %s32 = ssub.s32 256, 256
      %33 = vsyncadd [#allocation6], %s32
      %s34 = smul.addr %s30, 128
      %s35 = scalar_lea.hbm %s1, %s34
      %s36 = sshll.u32 [#allocation5], 4
      %s37 = int_to_ptr.vmem [resolvable:$true] %s36
      %42 = dma.hbm_to_vmem [thread:$0]  %s35, 256, %s37, [#allocation6], 128, 128, 8
    $region9: #{tpu_custom_call.1} parent=1 // pred_fallthru
      _
    // Predicated region
    $region10: #{tpu_custom_call.1} parent=1 // pred_check
      _
    $region11: #{tpu_custom_call.1} parent=1 // pred_check_branch
      %44 = sbr.rel (0) target = $region13
    $region12: #{tpu_custom_call.1} parent=1 // pred_region
      %s45 = sadd.s32 0, 0
      %s46 = smul.u32 2, %s45
      %s48 = ssub.s32 256, 256
      %49 = vsyncadd [#allocation6], %s48
      %s50 = smul.addr %s46, 128
      %s51 = scalar_lea.hbm %s2, %s50
      %s52 = sshll.u32 [#allocation7], 4
      %s53 = int_to_ptr.vmem [resolvable:$true] %s52
      %58 = dma.hbm_to_vmem [thread:$0]  %s51, 256, %s53, [#allocation6], 128, 128, 8
    $region13: #{tpu_custom_call.1} parent=1 // pred_fallthru
      _
    // Predicated region
    $region14: #{tpu_custom_call.1} parent=1 // pred_check
      _
    $region15: #{tpu_custom_call.1} parent=1 // pred_check_branch
      %60 = sbr.rel (0) target = $region17
    $region16: #{tpu_custom_call.1} parent=1 // pred_region
      %61 = dma.done [#allocation3], 256
    $region17: #{tpu_custom_call.1} parent=1 // pred_fallthru
      _
    // Predicated region
    $region18: #{tpu_custom_call.1} parent=1 // pred_check
      _
    $region19: #{tpu_custom_call.1} parent=1 // pred_check_branch
      %63 = sbr.rel (0) target = $region21
    $region20: #{tpu_custom_call.1} parent=1 // pred_region
      %64 = dma.done [#allocation6], 256
    $region21: #{tpu_custom_call.1} parent=1 // pred_fallthru
      _
    // Predicated region
    $region22: #{tpu_custom_call.1} parent=1 // pred_check
      _
    $region23: #{tpu_custom_call.1} parent=1 // pred_check_branch
      %66 = sbr.rel (0) target = $region25
    $region24: #{tpu_custom_call.1} parent=1 // pred_region
      %67 = dma.done [#allocation6], 256
    $region25: #{tpu_custom_call.1} parent=1 // pred_fallthru
      _
    %s68 = sadd.s32 0, 0
    %s69 = smul.u32 2, %s68
    %s70 = sadd.s32 0, 0
    %s71 = smul.u32 2, %s70
    %s72 = sadd.s32 0, 0
    %s73 = smul.u32 2, %s72
    %p74 = scmp.eq.s32.totalorder 0, 0
    // Predicated region
    $region26: #{tpu_custom_call.1} parent=1 // pred_check
      %p75 = pneg %p74
    $region27: #{tpu_custom_call.1} parent=1 // pred_check_branch
      %77 = sbr.rel (%p75) target = $region29
    $region28: #{tpu_custom_call.1} parent=1 // pred_region
      %78 = vst [vmem:[#allocation8] sm:$0xff] 0.0
      %79 = vst [vmem:[#allocation8 + $0x8] sm:$0xff] 0.0
    $region29: #{tpu_custom_call.1} parent=1 // pred_fallthru
      _
    %v80 = vld [vmem:[#allocation2] sm:$0xff]
    %v81 = vld [vmem:[#allocation2 + $0x8] sm:$0xff]
    %v82 = vld [vmem:[#allocation5] sm:$0xff]
    %v83 = vld [vmem:[#allocation5 + $0x8] sm:$0xff]
    %v84 = vld [vmem:[#allocation7] sm:$0xff]
    %v85 = vld [vmem:[#allocation7 + $0x8] sm:$0xff]
    %v86 = vsub.f32 %v80, %v84
    %v87 = vsub.f32 %v81, %v85
    %v88 = vsub.f32 %v82, %v84
    %v89 = vsub.f32 %v83, %v85
    %v90 = vand.u32 2147483647, %v86
    %v91 = vand.u32 2147483647, %v87
    %v92 = vand.u32 2147483647, %v88
    %v93 = vand.u32 2147483647, %v89
    %v94 = vadd.f32 %v90, %v91
    %v95 = vadd.f32 %v92, %v93
    %v96 = vld [vmem:[#allocation8] sm:$0xff]
    %v97 = vadd.f32 %v96, %v94
    %98 = vst [vmem:[#allocation8] sm:$0xff] %v97
    %s99 = scalar_lea.vmem [#allocation8], 8
    %v100 = vld [vmem:[%s99] sm:$0xff]
    %v101 = vadd.f32 %v100, %v95
    %102 = vst [vmem:[%s99] sm:$0xff] %v101
    // Predicated region
    $region30: #{tpu_custom_call.1} parent=1 // pred_check
      _
    $region31: #{tpu_custom_call.1} parent=1 // pred_check_branch
      %104 = sbr.rel (0) target = $region33
    $region32: #{tpu_custom_call.1} parent=1 // pred_region
      %s106 = ssub.s32 256, 256
      %107 = vsyncadd [#allocation4], %s106
      %s108 = sshll.u32 [#allocation8], 4
      %s109 = int_to_ptr.vmem [resolvable:$true] %s108
      %114 = dma.vmem_to_hbm [thread:$0]  %s109, 256, %s3, [#allocation4], 128, 128, 8
    $region33: #{tpu_custom_call.1} parent=1 // pred_fallthru
      _
    // Predicated region
    $region34: #{tpu_custom_call.1} parent=1 // pred_check
      _
    $region35: #{tpu_custom_call.1} parent=1 // pred_check_branch
      %116 = sbr.rel (0) target = $region37
    $region36: #{tpu_custom_call.1} parent=1 // pred_region
      %117 = dma.done [#allocation4], 256
    $region37: #{tpu_custom_call.1} parent=1 // pred_fallthru
      _
    %118 = vsyncpa [#allocation3], 1
    %119 = vsyncpa [#allocation6], 1
    %120 = vsyncpa [#allocation4], 1

</llo_original>
